<compile_context>
chip_gen: v5e
topology: v5e:2x2
jax: 0.10.0
libtpu: 0.0.40
codegen_flags: <defaults>
</compile_context>

<pallas_src>
import functools

import jax
import jax.numpy as jnp
from jax.experimental import pallas as pl
from jax.experimental.pallas import tpu as pltpu


LANE = 128  # TPU lane width; feature dims are padded to a multiple of this.


def _round_up(x, m):
    return ((x + m - 1) // m) * m


def _gate_trans_kernel(x_ref, w1_ref, b1_ref, w2_ref, b2_ref, o_ref):
    # x_ref : (tm, in_p)    row tile of the fused input (MXU dtype, e.g. bf16)
    # w1_ref: (in_p, in_p), b1_ref: (1, in_p)   f32 bias
    # w2_ref: (in_p, out_p), b2_ref: (1, out_p) f32 bias
    # o_ref : (tm, out_p)   f32 output tile
    x = x_ref[...]

    # linear1: bf16 operands on the MXU, f32 accumulate; bias + relu in f32.
    h = jnp.dot(x, w1_ref[...], preferred_element_type=jnp.float32)
    h = jnp.maximum(h + b1_ref[...].astype(jnp.float32), 0.0)

    # gate with the original input (f32 elementwise on the VPU).
    h = h * x.astype(jnp.float32)

    # linear2: feed the MXU bf16 operands again, keep f32 accumulation.
    out = jnp.dot(h.astype(x.dtype), w2_ref[...],
                  preferred_element_type=jnp.float32)
    out = out + b2_ref[...].astype(jnp.float32)
    o_ref[...] = out.astype(o_ref.dtype)


@functools.partial(jax.jit, static_argnames=("tile_m",))
def _gate_trans_fused(x, w1, b1, w2, b2, *, tile_m):
    """x: [N_pad, in_p]; all dims already padded; N_pad % tile_m == 0."""
    n_pad, in_p = x.shape
    out_p = w2.shape[1]
    grid = (n_pad // tile_m,)
    # TODO(synk): for very large in_dim (>= ~1024) add a K-reduction grid axis
    # with a VMEM f32 accumulator instead of loading W1/W2 whole (v7x VMEM).
    return pl.pallas_call(
        _gate_trans_kernel,
        out_shape=jax.ShapeDtypeStruct((n_pad, out_p), jnp.float32),
        grid_spec=pltpu.PrefetchScalarGridSpec(
            num_scalar_prefetch=0,
            grid=grid,
            in_specs=[
                pl.BlockSpec((tile_m, in_p), lambda i: (i, 0)),   # x row tile
                pl.BlockSpec((in_p, in_p),   lambda i: (0, 0)),   # W1 (in,out)
                pl.BlockSpec((1, in_p),      lambda i: (0, 0)),   # b1
                pl.BlockSpec((in_p, out_p),  lambda i: (0, 0)),   # W2 (in,out)
                pl.BlockSpec((1, out_p),     lambda i: (0, 0)),   # b2
            ],
            out_specs=pl.BlockSpec((tile_m, out_p), lambda i: (i, 0)),
        ),
        compiler_params=pltpu.CompilerParams(
            # row tiles are independent -> shard across TensorCores (v7x).
            dimension_semantics=("parallel",),
        ),
    )(x, w1, b1, w2, b2)


def gate_trans(data, params, *, tile_m=256, mxu_dtype=jnp.bfloat16):
    """Dict-in / dict-out forward, mirroring Gate_Trans.forward.

    All node-type matrices are concatenated row-wise, zero-padded to
    lane-dense feature widths and a tile-aligned row count, and run through
    a single pallas_call; outputs are split back and padding stripped.
    """
    w1_t, b1, w2_t, b2 = params
    in_dim = w1_t.shape[0]
    out_dim = w2_t.shape[1]
    in_p = _round_up(in_dim, LANE)
    out_p = _round_up(out_dim, LANE)

    keys = list(data.keys())
    sizes = [int(data[j].shape[0]) for j in keys]
    n_total = sum(sizes)

    # Pick a big (MXU-friendly) tile, but guarantee a >= 2-step grid when N is
    # small so the "parallel" axis can use both v7x TensorCores.
    if n_total >= 2 * tile_m:
        tm = tile_m
    else:
        tm = max(8, min(tile_m, _round_up(pl.cdiv(n_total, 2), 8)))
    n_pad = _round_up(max(n_total, tm), tm)

    # One [N_pad, in_p] slab. Zero padding is inert: relu(0 + 0) * 0 == 0 and
    # zero-padded weight rows/cols contribute nothing.
    x_cat = jnp.concatenate([data[j] for j in keys], axis=0)
    x_pad = jnp.zeros((n_pad, in_p), mxu_dtype)
    x_pad = x_pad.at[:n_total, :in_dim].set(x_cat.astype(mxu_dtype))

    # Pad weights once; keep MXU operands in bf16, biases in f32.
    w1p = jnp.zeros((in_p, in_p), mxu_dtype).at[:in_dim, :in_dim].set(
        w1_t.astype(mxu_dtype))
    b1p = jnp.zeros((1, in_p), jnp.float32).at[:, :in_dim].set(
        b1.astype(jnp.float32))
    w2p = jnp.zeros((in_p, out_p), mxu_dtype).at[:in_dim, :out_dim].set(
        w2_t.astype(mxu_dtype))
    b2p = jnp.zeros((1, out_p), jnp.float32).at[:, :out_dim].set(
        b2.astype(jnp.float32))

    out_pad = _gate_trans_fused(x_pad, w1p, b1p, w2p, b2p, tile_m=tm)

    # Split back into the dict and strip row / lane padding.
    out = {}
    off = 0
    for j, n in zip(keys, sizes):
        out[j] = out_pad[off:off + n, :out_dim].astype(data[j].dtype)
        off += n
    return out


def init_params(key, in_dim, out_dim, dtype=jnp.float32):
    """Deterministic parameter init (shapes match nn.Linear, pre-transposed)."""
    k1, k2, k3, k4 = jax.random.split(key, 4)
    # stored as [in, out] so the kernel does x @ W
    w1_t = jax.random.normal(k1, (in_dim, in_dim), dtype) / jnp.sqrt(in_dim)
    b1 = jax.random.normal(k2, (1, in_dim), dtype) * 0.01
    w2_t = jax.random.normal(k3, (in_dim, out_dim), dtype) / jnp.sqrt(in_dim)
    b2 = jax.random.normal(k4, (1, out_dim), dtype) * 0.01
    return w1_t, b1, w2_t, b2


def gate_trans_ref(data, params):
    """Pure-JAX f32 reference for correctness checking."""
    w1_t, b1, w2_t, b2 = params
    out = {}
    for j, x in data.items():
        h = jnp.maximum(x @ w1_t + b1, 0.0) * x
        out[j] = h @ w2_t + b2
    return out


if __name__ == "__main__":
    in_dim, out_dim = 32, 16
    key = jax.random.PRNGKey(0)
    kp, kd1, kd2, kd3 = jax.random.split(key, 4)

    params = init_params(kp, in_dim, out_dim)

    # dict of node-type feature matrices (ntype_list analogue)
    data = {
        "paper":  jax.random.normal(kd1, (16, in_dim), jnp.float32),
        "author": jax.random.normal(kd2, (8,  in_dim), jnp.float32),
        "venue":  jax.random.normal(kd3, (8,  in_dim), jnp.float32),
    }

    out = gate_trans(data, params)
    for v in out.values():
        jax.block_until_ready(v)

    ref = gate_trans_ref(data, params)
    for j in data:
        assert out[j].shape == (data[j].shape[0], out_dim)
        scale = float(jnp.maximum(jnp.max(jnp.abs(ref[j])), 1.0))
        err = float(jnp.max(jnp.abs(out[j] - ref[j])))
        # bf16 MXU operands with f32 accumulation -> small relative deviation
        assert err / scale < 5e-2, f"mismatch for {j}: {err}"

    print("KERNEL_OK")
</pallas_src>

<mosaic_0001>
module attributes {stable_mosaic.version = 11 : i64} {
  func.func @_gate_trans_kernel(%arg0: i32, %arg1: memref<16x128xbf16, #tpu.memory_space<vmem>>, %arg2: memref<128x128xbf16, #tpu.memory_space<vmem>>, %arg3: memref<1x128xf32, #tpu.memory_space<vmem>>, %arg4: memref<128x128xbf16, #tpu.memory_space<vmem>>, %arg5: memref<1x128xf32, #tpu.memory_space<vmem>>, %arg6: memref<16x128xf32, #tpu.memory_space<vmem>>) attributes {dimension_semantics = [#tpu.dimension_semantics<parallel>], iteration_bounds = array<i64: 2>, scalar_prefetch = 0 : i64, scratch_operands = 0 : i64, tpu.core_type = #tpu.core_type<tc>, window_params = [{transform_indices = @transform_0, window_bounds = array<i64: 16, 128>}, {pipeline_mode = #tpu.pipeline_mode<synchronous>, transform_indices = @transform_1, window_bounds = array<i64: 128, 128>}, {pipeline_mode = #tpu.pipeline_mode<synchronous>, transform_indices = @transform_2, window_bounds = array<i64: 1, 128>}, {pipeline_mode = #tpu.pipeline_mode<synchronous>, transform_indices = @transform_3, window_bounds = array<i64: 128, 128>}, {pipeline_mode = #tpu.pipeline_mode<synchronous>, transform_indices = @transform_4, window_bounds = array<i64: 1, 128>}, {transform_indices = @transform_5, window_bounds = array<i64: 16, 128>}]} {
    %c0 = arith.constant 0 : index
    %c0_0 = arith.constant 0 : index
    %0 = vector.load %arg1[%c0, %c0_0] : memref<16x128xbf16, #tpu.memory_space<vmem>>, vector<16x128xbf16>
    %c0_1 = arith.constant 0 : index
    %c0_2 = arith.constant 0 : index
    %1 = vector.load %arg2[%c0_1, %c0_2] : memref<128x128xbf16, #tpu.memory_space<vmem>>, vector<128x128xbf16>
    %cst = arith.constant dense<0.000000e+00> : vector<16x128xf32>
    %2 = tpu.matmul %0, %1, %cst {dimension_numbers = #tpu.dot_dimension_numbers<[1], [0], [0], [1], [0, 0, 1, 1], [], []>} : vector<16x128xbf16>, vector<128x128xbf16>, vector<16x128xf32> -> vector<16x128xf32>
    %c0_3 = arith.constant 0 : index
    %c0_4 = arith.constant 0 : index
    %3 = vector.load %arg3[%c0_3, %c0_4] : memref<1x128xf32, #tpu.memory_space<vmem>>, vector<1x128xf32>
    %4 = vector.broadcast %3 : vector<1x128xf32> to vector<16x128xf32>
    %5 = arith.addf %2, %4 : vector<16x128xf32>
    %cst_5 = arith.constant 0.000000e+00 : f32
    %6 = vector.broadcast %cst_5 : f32 to vector<16x128xf32>
    %7 = arith.maximumf %5, %6 : vector<16x128xf32>
    %8 = arith.extf %0 : vector<16x128xbf16> to vector<16x128xf32>
    %9 = arith.mulf %7, %8 : vector<16x128xf32>
    %10 = arith.truncf %9 : vector<16x128xf32> to vector<16x128xbf16>
    %c0_6 = arith.constant 0 : index
    %c0_7 = arith.constant 0 : index
    %11 = vector.load %arg4[%c0_6, %c0_7] : memref<128x128xbf16, #tpu.memory_space<vmem>>, vector<128x128xbf16>
    %cst_8 = arith.constant dense<0.000000e+00> : vector<16x128xf32>
    %12 = tpu.matmul %10, %11, %cst_8 {dimension_numbers = #tpu.dot_dimension_numbers<[1], [0], [0], [1], [0, 0, 1, 1], [], []>} : vector<16x128xbf16>, vector<128x128xbf16>, vector<16x128xf32> -> vector<16x128xf32>
    %c0_9 = arith.constant 0 : index
    %c0_10 = arith.constant 0 : index
    %13 = vector.load %arg5[%c0_9, %c0_10] : memref<1x128xf32, #tpu.memory_space<vmem>>, vector<1x128xf32>
    %14 = vector.broadcast %13 : vector<1x128xf32> to vector<16x128xf32>
    %15 = arith.addf %12, %14 : vector<16x128xf32>
    %c0_11 = arith.constant 0 : index
    %c0_12 = arith.constant 0 : index
    %16 = vector.load %arg6[%c0_11, %c0_12] : memref<16x128xf32, #tpu.memory_space<vmem>>, vector<16x128xf32>
    tpu.vector_store %arg6[%c0_11, %c0_12], %15 {strides = array<i32>} : memref<16x128xf32, #tpu.memory_space<vmem>>, vector<16x128xf32>,
    return
  }
  func.func @transform_0(%arg0: i32) -> (i32, i32) {
    %c0_i32 = arith.constant 0 : i32
    %c0_i32_0 = arith.constant 0 : i32
    return %arg0, %c0_i32 : i32, i32
  }
  func.func @transform_1(%arg0: i32) -> (i32, i32) {
    %c0_i32 = arith.constant 0 : i32
    %c0_i32_0 = arith.constant 0 : i32
    %c0_i32_1 = arith.constant 0 : i32
    return %c0_i32, %c0_i32_0 : i32, i32
  }
  func.func @transform_2(%arg0: i32) -> (i32, i32) {
    %c0_i32 = arith.constant 0 : i32
    %c0_i32_0 = arith.constant 0 : i32
    %c0_i32_1 = arith.constant 0 : i32
    return %c0_i32, %c0_i32_0 : i32, i32
  }
  func.func @transform_3(%arg0: i32) -> (i32, i32) {
    %c0_i32 = arith.constant 0 : i32
    %c0_i32_0 = arith.constant 0 : i32
    %c0_i32_1 = arith.constant 0 : i32
    return %c0_i32, %c0_i32_0 : i32, i32
  }
  func.func @transform_4(%arg0: i32) -> (i32, i32) {
    %c0_i32 = arith.constant 0 : i32
    %c0_i32_0 = arith.constant 0 : i32
    %c0_i32_1 = arith.constant 0 : i32
    return %c0_i32, %c0_i32_0 : i32, i32
  }
  func.func @transform_5(%arg0: i32) -> (i32, i32) {
    %c0_i32 = arith.constant 0 : i32
    %c0_i32_0 = arith.constant 0 : i32
    return %arg0, %c0_i32 : i32, i32
  }
}

</mosaic_0001>

<llo_original>
// kernel: _gate_trans_fused.1
$region0: #{_gate_trans_fused.1}
  #allocation0 [shape = 'u32[]', space=smem, size = 0x4, offset = 0x4, fixed_abs, tag = 'smem constant byte address 0x4 - core index']
  #allocation1 [shape = 'u32[72,128]{1,0:T(1,128)}', space=vmem, size = 0x9000, scoped, tag = 'internal scratch']
  %s0 = inlined_call_operand.hbm [shape: bf16[32,128], index: 0, kind: input, shape index: {}]
  %s1 = inlined_call_operand.hbm [shape: bf16[128,128], index: 1, kind: input, shape index: {}]
  %s2 = inlined_call_operand.vmem [shape: f32[1,128], index: 2, kind: input, shape index: {}]
  %s3 = inlined_call_operand.hbm [shape: bf16[128,128], index: 3, kind: input, shape index: {}]
  %s4 = inlined_call_operand.vmem [shape: f32[1,128], index: 4, kind: input, shape index: {}]
  %s5 = inlined_call_operand.hbm [shape: f32[32,128], index: 5, kind: output, shape index: {}]
  %s6 = sld [smem:[#allocation0]]
  $region65: #{_gate_trans_fused.1} parent=0
    _
  %s8 = ssub.s32 1, %s6
  %s9 = scalar_select 0, %s8, %s6
  $region1: #{_gate_trans_fused.1} parent=0
    #allocation2 [shape = 'u8[8192]{0}', space=vmem, size = 0x2000, scoped, tag = 'input window, operand 0']
    #allocation3 [shape = 's32[2]{0}', space=sflag, size = 0x8, scoped, tag = 'scoped memory for _gate_trans_fused.1']
    #allocation4 [shape = 's32[2]{0}', space=sflag, size = 0x8, scoped, tag = 'scoped memory for _gate_trans_fused.1']
    #allocation5 [shape = 'u8[32768]{0}', space=vmem, size = 0x8000, scoped, tag = 'input window, operand 1, single buffered']
    #allocation6 [shape = 's32[1]{0}', space=sflag, size = 0x4, scoped, tag = 'scoped memory for _gate_trans_fused.1']
    #allocation7 [shape = 'u8[32768]{0}', space=vmem, size = 0x8000, scoped, tag = 'input window, operand 3, single buffered']
    #allocation8 [shape = 'u8[16384]{0}', space=vmem, size = 0x4000, scoped, tag = 'output window, operand 0']
    %10 = vsyncpa [#allocation3], 0
    %s11 = scalar_lea.sflag [#allocation3], 1
    %12 = vsyncpa %s11, 0
    %13 = vsyncpa [#allocation6], 0
    %14 = vsyncpa [#allocation4], 0
    %s15 = scalar_lea.sflag [#allocation4], 1
    %16 = vsyncpa %s15, 0
    loop: start=0, step=1, limit=4
    $region2: #{_gate_trans_fused.1} parent=1 // loop_pre_header
      _
    $region3: #{_gate_trans_fused.1} parent=1 // loop_header
      %s18 = sphi 0, %s22
      %p19 = scmp.ge.s32.totalorder %s18, 4
      %s28 = sphi 0, %s30
      %s31 = sphi 0, %s28
      %s32 = sphi 0, %s31
      %s48 = sphi 0, %s32
      %s52 = sphi 0, %s52
      %s54 = sphi 0, %s52
      %s55 = sphi 0, %s54
      %s69 = sphi 0, %s55
      %s73 = sphi 0, %s73
      %s75 = sphi 0, %s73
      %s76 = sphi 0, %s75
      %s90 = sphi 0, %s76
      %s94 = sphi 0, %s94
      %s96 = sphi 0, %s94
      %s97 = sphi 0, %s96
      %s111 = sphi 0, %s97
      %s115 = sphi 0, %s115
      %s117 = sphi 0, %s115
      %s118 = sphi 0, %s117
      %s132 = sphi 0, %s118
      %s138 = sphi 0, %s140
      %s141 = sphi 0, %s138
      %s142 = sphi 0, %s141
      %s158 = sphi 0, %s142
    $region4: #{_gate_trans_fused.1} parent=1 // loop_header_branch
      %21 = sbr.rel (%p19) target = $region8
    $region5: #{_gate_trans_fused.1} parent=1 // loop_body
      %s23 = ssub.s32 %s18, 1
      %s24 = ssub.s32 %s18, 2
      %s25 = sadd.s32 %s18, 1
      %s26 = ssub.s32 %s18, %s25
      %p27 = scmp.eq.s32.totalorder %s26, 0
      %s29 = sadd.s32 %s28, 1
      %s30 = scalar_select %p27, %s28, %s29
      %p33 = pneg %p27
      %p34 = scmp.eq.s32.totalorder %s18, 1
      %p35 = por %p33, %p34
      %p36 = scmp.ne.s32.totalorder %s28, %s31
      %p37 = scmp.eq.s32.totalorder %s18, 0
      %p38 = por %p36, %p37
      %p39 = scmp.ne.s32.totalorder %s28, %s31
      %p40 = scmp.eq.s32.totalorder %s23, 1
      %p41 = por %p39, %p40
      %p42 = scmp.ne.s32.totalorder %s31, %s32
      %p43 = scmp.eq.s32.totalorder %s23, 0
      %p44 = por %p42, %p43
      %p45 = scmp.ne.s32.totalorder %s31, %s32
      %p46 = scmp.eq.s32.totalorder %s24, 1
      %p47 = por %p45, %p46
      %p49 = scmp.ne.s32.totalorder %s32, %s48
      %p50 = scmp.eq.s32.totalorder %s24, 0
      %p51 = por %p49, %p50
      %s53 = sadd.s32 %s52, 1
      %p56 = scmp.eq.s32.totalorder %s18, 1
      %p57 = scmp.ne.s32.totalorder %s52, %s54
      %p58 = scmp.eq.s32.totalorder %s18, 0
      %p59 = por %p57, %p58
      %p60 = scmp.ne.s32.totalorder %s52, %s54
      %p61 = scmp.eq.s32.totalorder %s23, 1
      %p62 = por %p60, %p61
      %p63 = scmp.ne.s32.totalorder %s54, %s55
      %p64 = scmp.eq.s32.totalorder %s23, 0
      %p65 = por %p63, %p64
      %p66 = scmp.ne.s32.totalorder %s54, %s55
      %p67 = scmp.eq.s32.totalorder %s24, 1
      %p68 = por %p66, %p67
      %p70 = scmp.ne.s32.totalorder %s55, %s69
      %p71 = scmp.eq.s32.totalorder %s24, 0
      %p72 = por %p70, %p71
      %s74 = sadd.s32 %s73, 1
      %p77 = scmp.eq.s32.totalorder %s18, 1
      %p78 = scmp.ne.s32.totalorder %s73, %s75
      %p79 = scmp.eq.s32.totalorder %s18, 0
      %p80 = por %p78, %p79
      %p81 = scmp.ne.s32.totalorder %s73, %s75
      %p82 = scmp.eq.s32.totalorder %s23, 1
      %p83 = por %p81, %p82
      %p84 = scmp.ne.s32.totalorder %s75, %s76
      %p85 = scmp.eq.s32.totalorder %s23, 0
      %p86 = por %p84, %p85
      %p87 = scmp.ne.s32.totalorder %s75, %s76
      %p88 = scmp.eq.s32.totalorder %s24, 1
      %p89 = por %p87, %p88
      %p91 = scmp.ne.s32.totalorder %s76, %s90
      %p92 = scmp.eq.s32.totalorder %s24, 0
      %p93 = por %p91, %p92
      %s95 = sadd.s32 %s94, 1
      %p98 = scmp.eq.s32.totalorder %s18, 1
      %p99 = scmp.ne.s32.totalorder %s94, %s96
      %p100 = scmp.eq.s32.totalorder %s18, 0
      %p101 = por %p99, %p100
      %p102 = scmp.ne.s32.totalorder %s94, %s96
      %p103 = scmp.eq.s32.totalorder %s23, 1
      %p104 = por %p102, %p103
      %p105 = scmp.ne.s32.totalorder %s96, %s97
      %p106 = scmp.eq.s32.totalorder %s23, 0
      %p107 = por %p105, %p106
      %p108 = scmp.ne.s32.totalorder %s96, %s97
      %p109 = scmp.eq.s32.totalorder %s24, 1
      %p110 = por %p108, %p109
      %p112 = scmp.ne.s32.totalorder %s97, %s111
      %p113 = scmp.eq.s32.totalorder %s24, 0
      %p114 = por %p112, %p113
      %s116 = sadd.s32 %s115, 1
      %p119 = scmp.eq.s32.totalorder %s18, 1
      %p120 = scmp.ne.s32.totalorder %s115, %s117
      %p121 = scmp.eq.s32.totalorder %s18, 0
      %p122 = por %p120, %p121
      %p123 = scmp.ne.s32.totalorder %s115, %s117
      %p124 = scmp.eq.s32.totalorder %s23, 1
      %p125 = por %p123, %p124
      %p126 = scmp.ne.s32.totalorder %s117, %s118
      %p127 = scmp.eq.s32.totalorder %s23, 0
      %p128 = por %p126, %p127
      %p129 = scmp.ne.s32.totalorder %s117, %s118
      %p130 = scmp.eq.s32.totalorder %s24, 1
      %p131 = por %p129, %p130
      %p133 = scmp.ne.s32.totalorder %s118, %s132
      %p134 = scmp.eq.s32.totalorder %s24, 0
      %p135 = por %p133, %p134
      %s136 = ssub.s32 %s18, %s25
      %p137 = scmp.eq.s32.totalorder %s136, 0
      %s139 = sadd.s32 %s138, 1
      %s140 = scalar_select %p137, %s138, %s139
      %p143 = pneg %p137
      %p144 = scmp.eq.s32.totalorder %s18, 1
      %p145 = por %p143, %p144
      %p146 = scmp.ne.s32.totalorder %s138, %s141
      %p147 = scmp.eq.s32.totalorder %s18, 0
      %p148 = por %p146, %p147
      %p149 = scmp.ne.s32.totalorder %s138, %s141
      %p150 = scmp.eq.s32.totalorder %s23, 1
      %p151 = por %p149, %p150
      %p152 = scmp.ne.s32.totalorder %s141, %s142
      %p153 = scmp.eq.s32.totalorder %s23, 0
      %p154 = por %p152, %p153
      %p155 = scmp.ne.s32.totalorder %s141, %s142
      %p156 = scmp.eq.s32.totalorder %s24, 1
      %p157 = por %p155, %p156
      %p159 = scmp.ne.s32.totalorder %s142, %s158
      %p160 = scmp.eq.s32.totalorder %s24, 0
      %p161 = por %p159, %p160
      %p162 = scmp.le.s32.totalorder 1, %s18
      %p163 = scmp.lt.s32.totalorder %s18, 3
      %p164 = pnand %p162, %p163
      %p165 = pneg %p164
      // Predicated region
      $region9: #{_gate_trans_fused.1} parent=5 // pred_check
        _
      $region10: #{_gate_trans_fused.1} parent=5 // pred_check_branch
        %167 = sbr.rel (%p164) target = $region12
      $region11: #{_gate_trans_fused.1} parent=5 // pred_region
        %s168 = ssub.s32 %s18, 1
        // Predicated region
        $region13: #{_gate_trans_fused.1} parent=11 // pred_check
          %p169 = pneg %p65
        $region14: #{_gate_trans_fused.1} parent=11 // pred_check_branch
          %171 = sbr.rel (%p169) target = $region16
        $region15: #{_gate_trans_fused.1} parent=11 // pred_region
          %173 = vsyncadd [#allocation6], 0
          %s174 = sshll.u32 %s1, 4
          %s175 = int_to_ptr.hbm [resolvable:$true] %s174
          %s176 = sshll.u32 [#allocation5], 4
          %s177 = int_to_ptr.vmem [resolvable:$true] %s176
          %182 = dma.hbm_to_vmem [thread:$0]  %s175, 1024, %s177, [#allocation6], 64, 64, 4
        $region16: #{_gate_trans_fused.1} parent=11 // pred_fallthru
          _
        // Predicated region
        $region17: #{_gate_trans_fused.1} parent=11 // pred_check
          %p183 = pneg %p86
        $region18: #{_gate_trans_fused.1} parent=11 // pred_check_branch
          %185 = sbr.rel (%p183) target = $region20
        $region19: #{_gate_trans_fused.1} parent=11 // pred_region
          _
        $region20: #{_gate_trans_fused.1} parent=11 // pred_fallthru
          _
        // Predicated region
        $region21: #{_gate_trans_fused.1} parent=11 // pred_check
          %p186 = pneg %p107
        $region22: #{_gate_trans_fused.1} parent=11 // pred_check_branch
          %188 = sbr.rel (%p186) target = $region24
        $region23: #{_gate_trans_fused.1} parent=11 // pred_region
          %190 = vsyncadd [#allocation6], 0
          %s191 = sshll.u32 %s3, 4
          %s192 = int_to_ptr.hbm [resolvable:$true] %s191
          %s193 = sshll.u32 [#allocation7], 4
          %s194 = int_to_ptr.vmem [resolvable:$true] %s193
          %199 = dma.hbm_to_vmem [thread:$0]  %s192, 1024, %s194, [#allocation6], 64, 64, 4
        $region24: #{_gate_trans_fused.1} parent=11 // pred_fallthru
          _
        // Predicated region
        $region25: #{_gate_trans_fused.1} parent=11 // pred_check
          %p200 = pneg %p128
        $region26: #{_gate_trans_fused.1} parent=11 // pred_check_branch
          %202 = sbr.rel (%p200) target = $region28
        $region27: #{_gate_trans_fused.1} parent=11 // pred_region
          _
        $region28: #{_gate_trans_fused.1} parent=11 // pred_fallthru
          _
      $region12: #{_gate_trans_fused.1} parent=5 // pred_fallthru
        _
      %p203 = scmp.lt.s32.totalorder %s18, 2
      // Predicated region
      $region29: #{_gate_trans_fused.1} parent=5 // pred_check
        %p204 = pneg %p203
      $region30: #{_gate_trans_fused.1} parent=5 // pred_check_branch
        %206 = sbr.rel (%p204) target = $region32
      $region31: #{_gate_trans_fused.1} parent=5 // pred_region
        // Predicated region
        $region33: #{_gate_trans_fused.1} parent=31 // pred_check
          %p207 = pneg %p38
        $region34: #{_gate_trans_fused.1} parent=31 // pred_check_branch
          %209 = sbr.rel (%p207) target = $region36
        $region35: #{_gate_trans_fused.1} parent=31 // pred_region
          %s210 = sand.u32 %s28, 1
          %s211 = scalar_lea.sflag [#allocation3], %s210
          %s212 = sand.u32 %s28, 1
          %s213 = smul.addr %s212, 8
          %s214 = scalar_lea.vmem [#allocation2], %s213
          %s215 = smul.u32 2, %s18
          %217 = vsyncadd %s211, 0
          %s218 = smul.addr %s215, 4
          %s219 = scalar_lea.hbm %s0, %s218
          %s220 = sshll.u32 %s219, 4
          %s221 = int_to_ptr.hbm [resolvable:$true] %s220
          %s222 = sshll.u32 %s214, 4
          %s223 = int_to_ptr.vmem [resolvable:$true] %s222
          %228 = dma.hbm_to_vmem [thread:$0]  %s221, 128, %s223, %s211, 64, 64, 4
        $region36: #{_gate_trans_fused.1} parent=31 // pred_fallthru
          _
      $region32: #{_gate_trans_fused.1} parent=5 // pred_fallthru
        _
      %p229 = scmp.le.s32.totalorder 1, %s18
      %p230 = scmp.lt.s32.totalorder %s18, 3
      %p231 = pnand %p229, %p230
      %p232 = pneg %p231
      // Predicated region
      $region37: #{_gate_trans_fused.1} parent=5 // pred_check
        _
      $region38: #{_gate_trans_fused.1} parent=5 // pred_check_branch
        %234 = sbr.rel (%p231) target = $region40
      $region39: #{_gate_trans_fused.1} parent=5 // pred_region
        %s235 = ssub.s32 %s18, 1
        %s236 = sand.u32 %s31, 1
        %s237 = scalar_lea.sflag [#allocation3], %s236
        %s238 = sand.u32 %s31, 1
        %s239 = smul.addr %s238, 8
        %s240 = scalar_lea.vmem [#allocation2], %s239
        // Predicated region
        $region41: #{_gate_trans_fused.1} parent=39 // pred_check
          %p241 = pneg %p44
        $region42: #{_gate_trans_fused.1} parent=39 // pred_check_branch
          %243 = sbr.rel (%p241) target = $region44
        $region43: #{_gate_trans_fused.1} parent=39 // pred_region
          %245 = dma.done %s237, 128
        $region44: #{_gate_trans_fused.1} parent=39 // pred_fallthru
          _
        // Predicated region
        $region45: #{_gate_trans_fused.1} parent=39 // pred_check
          %p246 = pneg %p65
        $region46: #{_gate_trans_fused.1} parent=39 // pred_check_branch
          %248 = sbr.rel (%p246) target = $region48
        $region47: #{_gate_trans_fused.1} parent=39 // pred_region
          %250 = dma.done [#allocation6], 1024
        $region48: #{_gate_trans_fused.1} parent=39 // pred_fallthru
          _
        // Predicated region
        $region49: #{_gate_trans_fused.1} parent=39 // pred_check
          %p251 = pneg %p107
        $region50: #{_gate_trans_fused.1} parent=39 // pred_check_branch
          %253 = sbr.rel (%p251) target = $region52
        $region51: #{_gate_trans_fused.1} parent=39 // pred_region
          %255 = dma.done [#allocation6], 1024
        $region52: #{_gate_trans_fused.1} parent=39 // pred_fallthru
          _
        %s256 = sand.u32 %s31, 1
        %s257 = scalar_lea.sflag [#allocation3], %s256
        %s258 = sand.u32 %s31, 1
        %s259 = smul.addr %s258, 8
        %s260 = scalar_lea.vmem [#allocation2], %s259
        %p261 = pneg %p44
        %p262 = pneg %p41
        %p263 = pneg %p65
        %p264 = pneg %p62
        %p265 = pneg %p86
        %p266 = pneg %p83
        %p267 = pneg %p107
        %p268 = pneg %p104
        %p269 = pneg %p128
        %p270 = pneg %p125
        %p271 = pneg %p154
        %p272 = pneg %p151
        %s273 = sand.u32 %s141, 1
        %s274 = scalar_lea.sflag [#allocation4], %s273
        %s275 = sand.u32 %s141, 1
        %s276 = smul.addr %s275, 16
        %s277 = scalar_lea.vmem [#allocation8], %s276
        %s278 = smul.u32 2, %s23
        %s279 = smul.u32 2, %s23
        %v280 = vld [vmem:[%s240] sm:$0xf]
        %v281 = vld [vmem:[%s240 + $0x4] sm:$0xf]
        %v282 = vld [vmem:[#allocation5] sm:$0xf]
        %v283 = vld [vmem:[#allocation5 + $0x4] sm:$0xf]
        %v284 = vld [vmem:[#allocation5 + $0x8] sm:$0xf]
        %v285 = vld [vmem:[#allocation5 + $0xc] sm:$0xf]
        %v286 = vld [vmem:[#allocation5 + $0x10] sm:$0xf]
        %v287 = vld [vmem:[#allocation5 + $0x14] sm:$0xf]
        %v288 = vld [vmem:[#allocation5 + $0x18] sm:$0xf]
        %v289 = vld [vmem:[#allocation5 + $0x1c] sm:$0xf]
        %v290 = vld [vmem:[#allocation5 + $0x20] sm:$0xf]
        %v291 = vld [vmem:[#allocation5 + $0x24] sm:$0xf]
        %v292 = vld [vmem:[#allocation5 + $0x28] sm:$0xf]
        %v293 = vld [vmem:[#allocation5 + $0x2c] sm:$0xf]
        %v294 = vld [vmem:[#allocation5 + $0x30] sm:$0xf]
        %v295 = vld [vmem:[#allocation5 + $0x34] sm:$0xf]
        %v296 = vld [vmem:[#allocation5 + $0x38] sm:$0xf]
        %v297 = vld [vmem:[#allocation5 + $0x3c] sm:$0xf]
        %v298 = vld [vmem:[%s2] sm:$0x1]
        %v300 = vperm.slane %v298, 0
        %v304 = vunpack.c.l.b16 %v280
        %v305 = vunpack.c.l.b16 %v281
        %v306 = vpack.c.b16 %v305, %v304
        %v324 = vunpack.c.l.b16 %v282
        %v325 = vunpack.c.l.b16 %v283
        %v326 = vunpack.c.l.b16 %v284
        %v327 = vunpack.c.l.b16 %v285
        %v328 = vunpack.c.l.b16 %v286
        %v329 = vunpack.c.l.b16 %v287
        %v330 = vunpack.c.l.b16 %v288
        %v331 = vunpack.c.l.b16 %v289
        %v332 = vunpack.c.l.b16 %v290
        %v333 = vunpack.c.l.b16 %v291
        %v334 = vunpack.c.l.b16 %v292
        %v335 = vunpack.c.l.b16 %v293
        %v336 = vunpack.c.l.b16 %v294
        %v337 = vunpack.c.l.b16 %v295
        %v338 = vunpack.c.l.b16 %v296
        %v339 = vunpack.c.l.b16 %v297
        %v340 = vpack.c.b16 %v325, %v324
        %v341 = vpack.c.b16 %v327, %v326
        %v342 = vpack.c.b16 %v329, %v328
        %v343 = vpack.c.b16 %v331, %v330
        %v344 = vpack.c.b16 %v333, %v332
        %v345 = vpack.c.b16 %v335, %v334
        %v346 = vpack.c.b16 %v337, %v336
        %v347 = vpack.c.b16 %v339, %v338
        %356 = vmatpush.bf16.msra.mxu0 %v347
        %357 = vmatpush.bf16.msra.mxu0 %v346
        %358 = vmatpush.bf16.msra.mxu0 %v345
        %359 = vmatpush.bf16.msra.mxu0 %v344
        %360 = vmatpush.bf16.msra.mxu0 %v343
        %361 = vmatpush.bf16.msra.mxu0 %v342
        %362 = vmatpush.bf16.msra.mxu0 %v341
        %363 = vmatpush.bf16.msra.mxu0 %v340
        %364 = vmatmul.bf16.gmra.mxu0 %v306
        %v365 = vpop.f32.mrf.mxu0
        %v366 = vadd.f32 %v300, %v365
        %v367 = vpop.f32.mrf.mxu0
        %v368 = vadd.f32 %v300, %v367
        %369 = vdwg.mxu0
        %v370 = vmax.f32 %v366, 0.0
        %v371 = vmax.f32 %v368, 0.0
        %v372 = vunpack.c.l.bf16 %v280
        %v373 = vunpack.c.l.bf16 %v281
        %v374 = vmul.f32 %v370, %v372
        %v375 = vmul.f32 %v371, %v373
        %v376 = vpack.c.bf16 %v375, %v374
        %v377 = vld [vmem:[#allocation7] sm:$0xf]
        %v378 = vld [vmem:[#allocation7 + $0x4] sm:$0xf]
        %v379 = vld [vmem:[#allocation7 + $0x8] sm:$0xf]
        %v380 = vld [vmem:[#allocation7 + $0xc] sm:$0xf]
        %v381 = vld [vmem:[#allocation7 + $0x10] sm:$0xf]
        %v382 = vld [vmem:[#allocation7 + $0x14] sm:$0xf]
        %v383 = vld [vmem:[#allocation7 + $0x18] sm:$0xf]
        %v384 = vld [vmem:[#allocation7 + $0x1c] sm:$0xf]
        %v385 = vld [vmem:[#allocation7 + $0x20] sm:$0xf]
        %v386 = vld [vmem:[#allocation7 + $0x24] sm:$0xf]
        %v387 = vld [vmem:[#allocation7 + $0x28] sm:$0xf]
        %v388 = vld [vmem:[#allocation7 + $0x2c] sm:$0xf]
        %v389 = vld [vmem:[#allocation7 + $0x30] sm:$0xf]
        %v390 = vld [vmem:[#allocation7 + $0x34] sm:$0xf]
        %v391 = vld [vmem:[#allocation7 + $0x38] sm:$0xf]
        %v392 = vld [vmem:[#allocation7 + $0x3c] sm:$0xf]
        %v393 = vld [vmem:[%s4] sm:$0x1]
        %v395 = vperm.slane %v393, 0
        %v413 = vunpack.c.l.b16 %v377
        %v414 = vunpack.c.l.b16 %v378
        %v415 = vunpack.c.l.b16 %v379
        %v416 = vunpack.c.l.b16 %v380
        %v417 = vunpack.c.l.b16 %v381
        %v418 = vunpack.c.l.b16 %v382
        %v419 = vunpack.c.l.b16 %v383
        %v420 = vunpack.c.l.b16 %v384
        %v421 = vunpack.c.l.b16 %v385
        %v422 = vunpack.c.l.b16 %v386
        %v423 = vunpack.c.l.b16 %v387
        %v424 = vunpack.c.l.b16 %v388
        %v425 = vunpack.c.l.b16 %v389
        %v426 = vunpack.c.l.b16 %v390
        %v427 = vunpack.c.l.b16 %v391
        %v428 = vunpack.c.l.b16 %v392
        %v429 = vpack.c.b16 %v414, %v413
        %v430 = vpack.c.b16 %v416, %v415
        %v431 = vpack.c.b16 %v418, %v417
        %v432 = vpack.c.b16 %v420, %v419
        %v433 = vpack.c.b16 %v422, %v421
        %v434 = vpack.c.b16 %v424, %v423
        %v435 = vpack.c.b16 %v426, %v425
        %v436 = vpack.c.b16 %v428, %v427
        %445 = vmatpush.bf16.msra.mxu0 %v436
        %446 = vmatpush.bf16.msra.mxu0 %v435
        %447 = vmatpush.bf16.msra.mxu0 %v434
        %448 = vmatpush.bf16.msra.mxu0 %v433
        %449 = vmatpush.bf16.msra.mxu0 %v432
        %450 = vmatpush.bf16.msra.mxu0 %v431
        %451 = vmatpush.bf16.msra.mxu0 %v430
        %452 = vmatpush.bf16.msra.mxu0 %v429
        %453 = vmatmul.bf16.gmra.mxu0 %v376
        %v454 = vpop.f32.mrf.mxu0
        %v455 = vadd.f32 %v395, %v454
        %v456 = vpop.f32.mrf.mxu0
        %v457 = vadd.f32 %v395, %v456
        %458 = vdwg.mxu0
        %459 = vst [vmem:[%s277] sm:$0xff] %v455
        %460 = vst [vmem:[%s277 + $0x8] sm:$0xff] %v457
        %s461 = sand.u32 %s141, 1
        %s462 = scalar_lea.sflag [#allocation4], %s461
        %s463 = sand.u32 %s141, 1
        %s464 = smul.addr %s463, 16
        %s465 = scalar_lea.vmem [#allocation8], %s464
        // Predicated region
        $region53: #{_gate_trans_fused.1} parent=39 // pred_check
          %p466 = pneg %p151
        $region54: #{_gate_trans_fused.1} parent=39 // pred_check_branch
          %468 = sbr.rel (%p466) target = $region56
        $region55: #{_gate_trans_fused.1} parent=39 // pred_region
          %s469 = smul.u32 2, %s23
          %471 = vsyncadd %s462, 0
          %s472 = smul.addr %s469, 8
          %s473 = scalar_lea.hbm %s5, %s472
          %s474 = sshll.u32 %s465, 4
          %s475 = int_to_ptr.vmem [resolvable:$true] %s474
          %s476 = sshll.u32 %s473, 4
          %s477 = int_to_ptr.hbm [resolvable:$true] %s476
          %482 = dma.vmem_to_hbm [thread:$0]  %s475, 256, %s477, %s462, 128, 128, 8
        $region56: #{_gate_trans_fused.1} parent=39 // pred_fallthru
          _
      $region40: #{_gate_trans_fused.1} parent=5 // pred_fallthru
        _
      %p483 = scmp.le.s32.totalorder 2, %s18
      // Predicated region
      $region57: #{_gate_trans_fused.1} parent=5 // pred_check
        %p484 = pneg %p483
      $region58: #{_gate_trans_fused.1} parent=5 // pred_check_branch
        %486 = sbr.rel (%p484) target = $region60
      $region59: #{_gate_trans_fused.1} parent=5 // pred_region
        %s487 = ssub.s32 %s18, 2
        // Predicated region
        $region61: #{_gate_trans_fused.1} parent=59 // pred_check
          %p488 = pneg %p157
        $region62: #{_gate_trans_fused.1} parent=59 // pred_check_branch
          %490 = sbr.rel (%p488) target = $region64
        $region63: #{_gate_trans_fused.1} parent=59 // pred_region
          %s491 = sand.u32 %s142, 1
          %s492 = scalar_lea.sflag [#allocation4], %s491
          %s493 = sand.u32 %s142, 1
          %s494 = smul.addr %s493, 16
          %s495 = scalar_lea.vmem [#allocation8], %s494
          %497 = dma.done %s492, 256
        $region64: #{_gate_trans_fused.1} parent=59 // pred_fallthru
          _
      $region60: #{_gate_trans_fused.1} parent=5 // pred_fallthru
        _
    $region6: #{_gate_trans_fused.1} parent=1 // loop_footer
      %s22 = sadd.s32 1, %s18
    $region7: #{_gate_trans_fused.1} parent=1 // loop_footer_branch
      %17 = sbr.rel target = $region3
    $region8: #{_gate_trans_fused.1} parent=1 // loop_exit
      _
    %498 = vsyncpa [#allocation3], 1
    %s499 = scalar_lea.sflag [#allocation3], 1
    %500 = vsyncpa %s499, 1
    %501 = vsyncpa [#allocation6], 1
    %502 = vsyncpa [#allocation4], 1
    %s503 = scalar_lea.sflag [#allocation4], 1
    %504 = vsyncpa %s503, 1

</llo_original>
